<compile_context>
chip_gen: v7x
topology: tpu7x:2x2x1
jax: 0.10.0
libtpu: 0.0.40
codegen_flags: <defaults>
</compile_context>

<pallas_src>
import jax
import jax.numpy as jnp
from jax.experimental import pallas as pl
from jax.experimental.pallas import tpu as pltpu


def _round_up(x, m):
    return ((x + m - 1) // m) * m


def _ffn_kernel(x_ref, w1_ref, b1_ref, w2_ref, b2_ref, o_ref, acc_ref):
    # x_ref:  (tm, H_pad)   row tile of flattened input (resident across P axis)
    # w1_ref: (H_pad, tp)   fc_1 weight column block ([in, out] layout)
    # b1_ref: (1, tp)       fc_1 bias block
    # w2_ref: (tp, H_pad)   fc_2 weight row block ([in, out] layout)
    # b2_ref: (1, H_pad)    fc_2 bias (constant across grid)
    # o_ref:  (tm, H_pad)   output row tile (same block across the P axis)
    # acc_ref:(tm, H_pad)   f32 accumulator scratch
    p = pl.program_id(1)

    @pl.when(p == 0)
    def _():
        # Fold the fc_2 bias into the accumulator init: last step is pure cast+store.
        acc_ref[...] = jnp.broadcast_to(
            b2_ref[...].astype(jnp.float32), acc_ref.shape
        )

    # h chunk = relu(x @ w1[:, p_blk] + b1[p_blk]); bias-add + ReLU + cast fused.
    h = jnp.dot(x_ref[...], w1_ref[...], preferred_element_type=jnp.float32)
    h = jnp.maximum(h + b1_ref[...].astype(jnp.float32), 0.0).astype(w2_ref.dtype)
    # dropout: identity in eval mode.
    acc_ref[...] += jnp.dot(h, w2_ref[...], preferred_element_type=jnp.float32)

    @pl.when(p == pl.num_programs(1) - 1)
    def _():
        o_ref[...] = acc_ref[...].astype(o_ref.dtype)


def positionwise_ffn(x, w1, b1, w2, b2, *, tm=256, tp=512,
                     vmem_limit_bytes=64 * 1024 * 1024):
    """x: [B, S, H]; w1: [H, P]; b1: [P]; w2: [P, H]; b2: [H] -> [B, S, H]."""
    B, S, H = x.shape
    P = w1.shape[1]
    M = B * S

    # Lane-align feature dims (multiples of 128) and row-align M to the tile; zero pads
    # are mathematically inert (relu(x@0 + 0) = 0 contributes nothing to fc2) and are
    # sliced off at the end. For real transformer dims these pads are no-ops.
    H_pad = _round_up(H, 128)
    P_pad = _round_up(P, 128)
    tm = min(tm, _round_up(M, 8))     # don't over-tile tiny demo problems
    tp = min(tp, P_pad)
    M_pad = _round_up(M, tm)

    x2d = jnp.pad(x.reshape(M, H), ((0, M_pad - M), (0, H_pad - H)))
    w1p = jnp.pad(w1, ((0, H_pad - H), (0, P_pad - P)))
    b1p = jnp.pad(b1.reshape(1, P), ((0, 0), (0, P_pad - P)))
    w2p = jnp.pad(w2, ((0, P_pad - P), (0, H_pad - H)))
    b2p = jnp.pad(b2.reshape(1, H), ((0, 0), (0, H_pad - H)))

    grid = (M_pad // tm, P_pad // tp)   # reduction (P) axis last

    cost = pl.CostEstimate(
        flops=4 * M * H * P,            # 2*M*H*P (fc1) + 2*M*P*H (fc2)
        transcendentals=0,
        bytes_accessed=(x.size + w1.size + b1.size + w2.size + b2.size + M * H)
        * x.dtype.itemsize,
    )

    out2d = pl.pallas_call(
        _ffn_kernel,
        out_shape=jax.ShapeDtypeStruct((M_pad, H_pad), x.dtype),
        grid_spec=pltpu.PrefetchScalarGridSpec(
            num_scalar_prefetch=0,
            grid=grid,
            in_specs=[
                pl.BlockSpec((tm, H_pad), lambda i, p: (i, 0)),   # x row tile (resident)
                pl.BlockSpec((H_pad, tp), lambda i, p: (0, p)),   # w1 column block
                pl.BlockSpec((1, tp), lambda i, p: (0, p)),       # b1 block
                pl.BlockSpec((tp, H_pad), lambda i, p: (p, 0)),   # w2 row block
                pl.BlockSpec((1, H_pad), lambda i, p: (0, 0)),    # b2 (constant)
            ],
            out_specs=pl.BlockSpec((tm, H_pad), lambda i, p: (i, 0)),
            scratch_shapes=[pltpu.VMEM((tm, H_pad), jnp.float32)],
        ),
        compiler_params=pltpu.CompilerParams(
            # M axis parallel (shards across TCs on megacore/v7x); P axis is the
            # accumulator reduction and must stay "arbitrary".
            dimension_semantics=("parallel", "arbitrary"),
            vmem_limit_bytes=vmem_limit_bytes,
        ),
        cost_estimate=cost,
    )(x2d, w1p, b1p, w2p, b2p)

    return out2d[:M, :H].reshape(B, S, H)


def _reference_ffn(x, w1, b1, w2, b2):
    h = jnp.maximum(jnp.einsum("bsh,hp->bsp", x, w1) + b1, 0.0)
    return jnp.einsum("bsp,ph->bsh", h, w2) + b2


if __name__ == "__main__":
    key = jax.random.PRNGKey(0)
    k_x, k_w1, k_b1, k_w2, k_b2 = jax.random.split(key, 5)

    B, S = 2, 8
    hid_dim, pf_dim = 32, 64

    x = jax.random.normal(k_x, (B, S, hid_dim), dtype=jnp.float32)
    # nn.Linear(hid_dim, pf_dim) weight is [pf_dim, hid_dim]; store transposed [in, out].
    w1 = jax.random.normal(k_w1, (hid_dim, pf_dim), dtype=jnp.float32) * 0.1
    b1 = jax.random.normal(k_b1, (pf_dim,), dtype=jnp.float32) * 0.1
    w2 = jax.random.normal(k_w2, (pf_dim, hid_dim), dtype=jnp.float32) * 0.1
    b2 = jax.random.normal(k_b2, (hid_dim,), dtype=jnp.float32) * 0.1

    out = positionwise_ffn(x, w1, b1, w2, b2)
    out = jax.block_until_ready(out)

    ref = _reference_ffn(x, w1, b1, w2, b2)
    assert out.shape == (B, S, hid_dim)
    assert jnp.allclose(out, ref, atol=1e-5, rtol=1e-5)

    print("KERNEL_OK")
</pallas_src>

<mosaic_0001>
module attributes {stable_mosaic.version = 11 : i64} {
  func.func @_ffn_kernel(%arg0: i32, %arg1: i32, %arg2: memref<16x128xf32, #tpu.memory_space<vmem>>, %arg3: memref<128x128xf32, #tpu.memory_space<vmem>>, %arg4: memref<1x128xf32, #tpu.memory_space<vmem>>, %arg5: memref<128x128xf32, #tpu.memory_space<vmem>>, %arg6: memref<1x128xf32, #tpu.memory_space<vmem>>, %arg7: memref<16x128xf32, #tpu.memory_space<vmem>>, %arg8: memref<16x128xf32, #tpu.memory_space<vmem>>) attributes {dimension_semantics = [#tpu.dimension_semantics<parallel>, #tpu.dimension_semantics<arbitrary>], iteration_bounds = array<i64: 1, 1>, scalar_prefetch = 0 : i64, scratch_operands = 1 : i64, tpu.core_type = #tpu.core_type<tc>, window_params = [{transform_indices = @transform_0, window_bounds = array<i64: 16, 128>}, {transform_indices = @transform_1, window_bounds = array<i64: 128, 128>}, {transform_indices = @transform_2, window_bounds = array<i64: 1, 128>}, {transform_indices = @transform_3, window_bounds = array<i64: 128, 128>}, {pipeline_mode = #tpu.pipeline_mode<synchronous>, transform_indices = @transform_4, window_bounds = array<i64: 1, 128>}, {transform_indices = @transform_5, window_bounds = array<i64: 16, 128>}]} {
    %c0_i32 = arith.constant 0 : i32
    %0 = arith.cmpi eq, %arg1, %c0_i32 : i32
    %1 = arith.extui %0 : i1 to i32
    %c0_i32_0 = arith.constant 0 : i32
    %2 = arith.cmpi ne, %1, %c0_i32_0 : i32
    scf.if %2 {
      %c0_16 = arith.constant 0 : index
      %c0_17 = arith.constant 0 : index
      %19 = vector.load %arg6[%c0_16, %c0_17] : memref<1x128xf32, #tpu.memory_space<vmem>>, vector<1x128xf32>
      %20 = vector.shape_cast %19 : vector<1x128xf32> to vector<1x128xf32>
      %21 = vector.broadcast %20 : vector<1x128xf32> to vector<16x128xf32>
      %c0_18 = arith.constant 0 : index
      %c0_19 = arith.constant 0 : index
      %22 = vector.load %arg8[%c0_18, %c0_19] : memref<16x128xf32, #tpu.memory_space<vmem>>, vector<16x128xf32>
      tpu.vector_store %arg8[%c0_18, %c0_19], %21 {strides = array<i32>} : memref<16x128xf32, #tpu.memory_space<vmem>>, vector<16x128xf32>,
    } else {
    }
    %c0 = arith.constant 0 : index
    %c0_1 = arith.constant 0 : index
    %3 = vector.load %arg2[%c0, %c0_1] : memref<16x128xf32, #tpu.memory_space<vmem>>, vector<16x128xf32>
    %c0_2 = arith.constant 0 : index
    %c0_3 = arith.constant 0 : index
    %4 = vector.load %arg3[%c0_2, %c0_3] : memref<128x128xf32, #tpu.memory_space<vmem>>, vector<128x128xf32>
    %cst = arith.constant dense<0.000000e+00> : vector<16x128xf32>
    %5 = tpu.matmul %3, %4, %cst {dimension_numbers = #tpu.dot_dimension_numbers<[1], [0], [0], [1], [0, 0, 1, 1], [], []>} : vector<16x128xf32>, vector<128x128xf32>, vector<16x128xf32> -> vector<16x128xf32>
    %c0_4 = arith.constant 0 : index
    %c0_5 = arith.constant 0 : index
    %6 = vector.load %arg4[%c0_4, %c0_5] : memref<1x128xf32, #tpu.memory_space<vmem>>, vector<1x128xf32>
    %7 = vector.broadcast %6 : vector<1x128xf32> to vector<16x128xf32>
    %8 = arith.addf %5, %7 : vector<16x128xf32>
    %cst_6 = arith.constant 0.000000e+00 : f32
    %9 = vector.broadcast %cst_6 : f32 to vector<16x128xf32>
    %10 = arith.maximumf %8, %9 : vector<16x128xf32>
    %c0_7 = arith.constant 0 : index
    %c0_8 = arith.constant 0 : index
    %11 = vector.load %arg8[%c0_7, %c0_8] : memref<16x128xf32, #tpu.memory_space<vmem>>, vector<16x128xf32>
    %c0_9 = arith.constant 0 : index
    %c0_10 = arith.constant 0 : index
    %12 = vector.load %arg5[%c0_9, %c0_10] : memref<128x128xf32, #tpu.memory_space<vmem>>, vector<128x128xf32>
    %cst_11 = arith.constant dense<0.000000e+00> : vector<16x128xf32>
    %13 = tpu.matmul %10, %12, %cst_11 {dimension_numbers = #tpu.dot_dimension_numbers<[1], [0], [0], [1], [0, 0, 1, 1], [], []>} : vector<16x128xf32>, vector<128x128xf32>, vector<16x128xf32> -> vector<16x128xf32>
    %14 = arith.addf %11, %13 : vector<16x128xf32>
    %c0_12 = arith.constant 0 : index
    %c0_13 = arith.constant 0 : index
    %15 = vector.load %arg8[%c0_12, %c0_13] : memref<16x128xf32, #tpu.memory_space<vmem>>, vector<16x128xf32>
    tpu.vector_store %arg8[%c0_12, %c0_13], %14 {strides = array<i32>} : memref<16x128xf32, #tpu.memory_space<vmem>>, vector<16x128xf32>,
    %c0_i32_14 = arith.constant 0 : i32
    %16 = arith.cmpi eq, %arg1, %c0_i32_14 : i32
    %17 = arith.extui %16 : i1 to i32
    %c0_i32_15 = arith.constant 0 : i32
    %18 = arith.cmpi ne, %17, %c0_i32_15 : i32
    scf.if %18 {
      %c0_16 = arith.constant 0 : index
      %c0_17 = arith.constant 0 : index
      %19 = vector.load %arg8[%c0_16, %c0_17] : memref<16x128xf32, #tpu.memory_space<vmem>>, vector<16x128xf32>
      %c0_18 = arith.constant 0 : index
      %c0_19 = arith.constant 0 : index
      %20 = vector.load %arg7[%c0_18, %c0_19] : memref<16x128xf32, #tpu.memory_space<vmem>>, vector<16x128xf32>
      tpu.vector_store %arg7[%c0_18, %c0_19], %19 {strides = array<i32>} : memref<16x128xf32, #tpu.memory_space<vmem>>, vector<16x128xf32>,
    } else {
    }
    return
  }
  func.func @transform_0(%arg0: i32, %arg1: i32) -> (i32, i32) {
    %c0_i32 = arith.constant 0 : i32
    %c0_i32_0 = arith.constant 0 : i32
    return %arg0, %c0_i32 : i32, i32
  }
  func.func @transform_1(%arg0: i32, %arg1: i32) -> (i32, i32) {
    %c0_i32 = arith.constant 0 : i32
    %c0_i32_0 = arith.constant 0 : i32
    return %c0_i32, %arg1 : i32, i32
  }
  func.func @transform_2(%arg0: i32, %arg1: i32) -> (i32, i32) {
    %c0_i32 = arith.constant 0 : i32
    %c0_i32_0 = arith.constant 0 : i32
    return %c0_i32, %arg1 : i32, i32
  }
  func.func @transform_3(%arg0: i32, %arg1: i32) -> (i32, i32) {
    %c0_i32 = arith.constant 0 : i32
    %c0_i32_0 = arith.constant 0 : i32
    return %arg1, %c0_i32 : i32, i32
  }
  func.func @transform_4(%arg0: i32, %arg1: i32) -> (i32, i32) {
    %c0_i32 = arith.constant 0 : i32
    %c0_i32_0 = arith.constant 0 : i32
    %c0_i32_1 = arith.constant 0 : i32
    return %c0_i32, %c0_i32_0 : i32, i32
  }
  func.func @transform_5(%arg0: i32, %arg1: i32) -> (i32, i32) {
    %c0_i32 = arith.constant 0 : i32
    %c0_i32_0 = arith.constant 0 : i32
    return %arg0, %c0_i32 : i32, i32
  }
}

</mosaic_0001>

<llo_original>
// kernel: tpu_custom_call.1
$region0: #{tpu_custom_call.1}
  #allocation0 [shape = 'u32[]', space=smem, size = 0x4, offset = 0x4, fixed_abs, tag = 'smem constant byte address 0x4 - core index']
  #allocation1 [shape = 'u32[144,128]{1,0:T(1,128)}', space=vmem, size = 0x12000, scoped, tag = 'internal scratch']
  #allocation2 [shape = 'f32[16,128]{1,0:T(8,128)}', space=vmem, size = 0x2000, scoped, tag = 'scratch operand']
  %s0 = inlined_call_operand.hbm [shape: f32[16,128], index: 0, kind: input, shape index: {}]
  %s1 = inlined_call_operand.hbm [shape: f32[128,128], index: 1, kind: input, shape index: {}]
  %s2 = inlined_call_operand.hbm [shape: f32[1,128], index: 2, kind: input, shape index: {}]
  %s3 = inlined_call_operand.hbm [shape: f32[128,128], index: 3, kind: input, shape index: {}]
  %s4 = inlined_call_operand.hbm [shape: f32[1,128], index: 4, kind: input, shape index: {}]
  %s5 = inlined_call_operand.hbm [shape: f32[16,128], index: 5, kind: output, shape index: {}]
  %s6 = sld [smem:[#allocation0]]
  $region58: #{tpu_custom_call.1} parent=0
    _
  %s8 = ssub.s32 1, %s6
  %s9 = scalar_select 0, %s8, %s6
  $region1: #{tpu_custom_call.1} parent=0
    #allocation3 [shape = 'u8[8192]{0}', space=vmem, size = 0x2000, scoped, tag = 'input window, operand 0, single buffered']
    #allocation4 [shape = 's32[1]{0}', space=sflag, size = 0x4, scoped, tag = 'scoped memory for tpu_custom_call.1']
    #allocation5 [shape = 's32[1]{0}', space=sflag, size = 0x4, scoped, tag = 'scoped memory for tpu_custom_call.1']
    #allocation6 [shape = 'u8[65536]{0}', space=vmem, size = 0x10000, scoped, tag = 'input window, operand 1, single buffered']
    #allocation7 [shape = 's32[1]{0}', space=sflag, size = 0x4, scoped, tag = 'scoped memory for tpu_custom_call.1']
    #allocation8 [shape = 'u8[512]{0}', space=vmem, size = 0x400, scoped, tag = 'input window, operand 2, single buffered']
    #allocation9 [shape = 'u8[65536]{0}', space=vmem, size = 0x10000, scoped, tag = 'input window, operand 3, single buffered']
    #allocation10 [shape = 's32[1]{0}', space=sflag, size = 0x4, scoped, tag = 'scoped memory for tpu_custom_call.1']
    #allocation11 [shape = 'u8[512]{0}', space=vmem, size = 0x400, scoped, tag = 'input window, operand 4, single buffered']
    #allocation12 [shape = 'u8[8192]{0}', space=vmem, size = 0x2000, scoped, tag = 'output window, operand 0, single buffered']
    %10 = vsyncpa [#allocation4], 0
    %11 = vsyncpa [#allocation7], 0
    %12 = vsyncpa [#allocation10], 0
    %13 = vsyncpa [#allocation5], 0
    // Predicated region
    $region2: #{tpu_custom_call.1} parent=1 // pred_check
      _
    $region3: #{tpu_custom_call.1} parent=1 // pred_check_branch
      %15 = sbr.rel (0) target = $region5
    $region4: #{tpu_custom_call.1} parent=1 // pred_region
      %s17 = ssub.s32 256, 256
      %18 = vsyncadd [#allocation4], %s17
      %s19 = sshll.u32 [#allocation3], 4
      %s20 = int_to_ptr.vmem [resolvable:$true] %s19
      %25 = dma.hbm_to_vmem [thread:$0]  %s0, 256, %s20, [#allocation4], 128, 128, 8
    $region5: #{tpu_custom_call.1} parent=1 // pred_fallthru
      _
    // Predicated region
    $region6: #{tpu_custom_call.1} parent=1 // pred_check
      _
    $region7: #{tpu_custom_call.1} parent=1 // pred_check_branch
      %27 = sbr.rel (0) target = $region9
    $region8: #{tpu_custom_call.1} parent=1 // pred_region
      %s29 = ssub.s32 2048, 2048
      %30 = vsyncadd [#allocation7], %s29
      %s31 = sshll.u32 [#allocation6], 4
      %s32 = int_to_ptr.vmem [resolvable:$true] %s31
      %37 = dma.hbm_to_vmem [thread:$0]  %s1, 2048, %s32, [#allocation7], 128, 128, 8
    $region9: #{tpu_custom_call.1} parent=1 // pred_fallthru
      _
    // Predicated region
    $region10: #{tpu_custom_call.1} parent=1 // pred_check
      _
    $region11: #{tpu_custom_call.1} parent=1 // pred_check_branch
      %39 = sbr.rel (0) target = $region13
    $region12: #{tpu_custom_call.1} parent=1 // pred_region
      %s41 = ssub.s32 16, 16
      %42 = vsyncadd [#allocation7], %s41
      %s44 = sshll.u32 [#allocation8], 4
      %s45 = int_to_ptr.vmem [resolvable:$true] %s44
      %47 = dma.hbm_to_vmem [thread:$0]  %s2, 16, %s45, [#allocation7]
    $region13: #{tpu_custom_call.1} parent=1 // pred_fallthru
      _
    // Predicated region
    $region14: #{tpu_custom_call.1} parent=1 // pred_check
      _
    $region15: #{tpu_custom_call.1} parent=1 // pred_check_branch
      %49 = sbr.rel (0) target = $region17
    $region16: #{tpu_custom_call.1} parent=1 // pred_region
      %s51 = ssub.s32 2048, 2048
      %52 = vsyncadd [#allocation10], %s51
      %s53 = sshll.u32 [#allocation9], 4
      %s54 = int_to_ptr.vmem [resolvable:$true] %s53
      %59 = dma.hbm_to_vmem [thread:$0]  %s3, 2048, %s54, [#allocation10], 128, 128, 8
    $region17: #{tpu_custom_call.1} parent=1 // pred_fallthru
      _
    // Predicated region
    $region18: #{tpu_custom_call.1} parent=1 // pred_check
      _
    $region19: #{tpu_custom_call.1} parent=1 // pred_check_branch
      %61 = sbr.rel (0) target = $region21
    $region20: #{tpu_custom_call.1} parent=1 // pred_region
      %s63 = ssub.s32 16, 16
      %64 = vsyncadd [#allocation10], %s63
      %s66 = sshll.u32 [#allocation11], 4
      %s67 = int_to_ptr.vmem [resolvable:$true] %s66
      %69 = dma.hbm_to_vmem [thread:$0]  %s4, 16, %s67, [#allocation10]
    $region21: #{tpu_custom_call.1} parent=1 // pred_fallthru
      _
    // Predicated region
    $region22: #{tpu_custom_call.1} parent=1 // pred_check
      _
    $region23: #{tpu_custom_call.1} parent=1 // pred_check_branch
      %71 = sbr.rel (0) target = $region25
    $region24: #{tpu_custom_call.1} parent=1 // pred_region
      %72 = dma.done [#allocation4], 256
    $region25: #{tpu_custom_call.1} parent=1 // pred_fallthru
      _
    // Predicated region
    $region26: #{tpu_custom_call.1} parent=1 // pred_check
      _
    $region27: #{tpu_custom_call.1} parent=1 // pred_check_branch
      %74 = sbr.rel (0) target = $region29
    $region28: #{tpu_custom_call.1} parent=1 // pred_region
      %75 = dma.done [#allocation7], 2048
    $region29: #{tpu_custom_call.1} parent=1 // pred_fallthru
      _
    // Predicated region
    $region30: #{tpu_custom_call.1} parent=1 // pred_check
      _
    $region31: #{tpu_custom_call.1} parent=1 // pred_check_branch
      %77 = sbr.rel (0) target = $region33
    $region32: #{tpu_custom_call.1} parent=1 // pred_region
      %78 = dma.done [#allocation7], 16
    $region33: #{tpu_custom_call.1} parent=1 // pred_fallthru
      _
    // Predicated region
    $region34: #{tpu_custom_call.1} parent=1 // pred_check
      _
    $region35: #{tpu_custom_call.1} parent=1 // pred_check_branch
      %80 = sbr.rel (0) target = $region37
    $region36: #{tpu_custom_call.1} parent=1 // pred_region
      %81 = dma.done [#allocation10], 2048
    $region37: #{tpu_custom_call.1} parent=1 // pred_fallthru
      _
    // Predicated region
    $region38: #{tpu_custom_call.1} parent=1 // pred_check
      _
    $region39: #{tpu_custom_call.1} parent=1 // pred_check_branch
      %83 = sbr.rel (0) target = $region41
    $region40: #{tpu_custom_call.1} parent=1 // pred_region
      %84 = dma.done [#allocation10], 16
    $region41: #{tpu_custom_call.1} parent=1 // pred_fallthru
      _
    %p85 = scmp.eq.s32.totalorder 0, 0
    // Predicated region
    $region42: #{tpu_custom_call.1} parent=1 // pred_check
      %p86 = pneg %p85
    $region43: #{tpu_custom_call.1} parent=1 // pred_check_branch
      %88 = sbr.rel (%p86) target = $region45
    $region44: #{tpu_custom_call.1} parent=1 // pred_region
      %v89 = vld [vmem:[#allocation11] sm:$0x1]
      %v91 = vlaneseq
      %v92 = vshrl.u32 %v91, 7
      %v93 = vsub.s32 0, %v92
      %v94 = vrot.slane %v89, %v93
      %96 = vst [vmem:[#allocation2] sm:$0xff] %v94
      %97 = vst [vmem:[#allocation2 + $0x8] sm:$0xff] %v94
    $region45: #{tpu_custom_call.1} parent=1 // pred_fallthru
      _
    %v98 = vld [vmem:[#allocation3] sm:$0xff]
    %v99 = vld [vmem:[#allocation3 + $0x8] sm:$0xff]
    %v100 = vld [vmem:[#allocation6] sm:$0xff]
    %v101 = vld [vmem:[#allocation6 + $0x8] sm:$0xff]
    %v102 = vld [vmem:[#allocation6 + $0x10] sm:$0xff]
    %v103 = vld [vmem:[#allocation6 + $0x18] sm:$0xff]
    %v104 = vld [vmem:[#allocation6 + $0x20] sm:$0xff]
    %v105 = vld [vmem:[#allocation6 + $0x28] sm:$0xff]
    %v106 = vld [vmem:[#allocation6 + $0x30] sm:$0xff]
    %v107 = vld [vmem:[#allocation6 + $0x38] sm:$0xff]
    %v108 = vld [vmem:[#allocation6 + $0x40] sm:$0xff]
    %v109 = vld [vmem:[#allocation6 + $0x48] sm:$0xff]
    %v110 = vld [vmem:[#allocation6 + $0x50] sm:$0xff]
    %v111 = vld [vmem:[#allocation6 + $0x58] sm:$0xff]
    %v112 = vld [vmem:[#allocation6 + $0x60] sm:$0xff]
    %v113 = vld [vmem:[#allocation6 + $0x68] sm:$0xff]
    %v114 = vld [vmem:[#allocation6 + $0x70] sm:$0xff]
    %v115 = vld [vmem:[#allocation6 + $0x78] sm:$0xff]
    %v116 = vld [vmem:[#allocation8] sm:$0x1]
    %v118 = vlaneseq
    %v119 = vshrl.u32 %v118, 7
    %v120 = vsub.s32 0, %v119
    %v121 = vrot.slane %v116, %v120
    %123 = vmatprep.subr.mxu0 0.0
    %124 = vmatpush1.msra.mxu0 %v100
    %125 = vmatprep.subr.mxu0 0.0
    %126 = vmatpush1.msra.mxu0 %v101
    %127 = vmatprep.subr.mxu0 0.0
    %128 = vmatpush1.msra.mxu0 %v102
    %129 = vmatprep.subr.mxu0 0.0
    %130 = vmatpush1.msra.mxu0 %v103
    %131 = vmatprep.subr.mxu0 0.0
    %132 = vmatpush1.msra.mxu0 %v104
    %133 = vmatprep.subr.mxu0 0.0
    %134 = vmatpush1.msra.mxu0 %v105
    %135 = vmatprep.subr.mxu0 0.0
    %136 = vmatpush1.msra.mxu0 %v106
    %137 = vmatprep.subr.mxu0 0.0
    %138 = vmatpush1.msra.mxu0 %v107
    %139 = vmatprep.subr.mxu0 0.0
    %140 = vmatpush1.msra.mxu0 %v108
    %141 = vmatprep.subr.mxu0 0.0
    %142 = vmatpush1.msra.mxu0 %v109
    %143 = vmatprep.subr.mxu0 0.0
    %144 = vmatpush1.msra.mxu0 %v110
    %145 = vmatprep.subr.mxu0 0.0
    %146 = vmatpush1.msra.mxu0 %v111
    %147 = vmatprep.subr.mxu0 0.0
    %148 = vmatpush1.msra.mxu0 %v112
    %149 = vmatprep.subr.mxu0 0.0
    %150 = vmatpush1.msra.mxu0 %v113
    %151 = vmatprep.subr.mxu0 0.0
    %152 = vmatpush1.msra.mxu0 %v114
    %153 = vmatprep.subr.mxu0 0.0
    %154 = vmatpush1.msra.mxu0 %v115
    %155 = vmatprep.subr.mxu0 0.0
    %156 = vmatpush1.msra.mxu0 0.0
    %157 = vmatprep.subr.mxu0 0.0
    %158 = vmatpush1.msra.mxu0 0.0
    %159 = vmatprep.subr.mxu0 0.0
    %160 = vmatpush1.msra.mxu0 0.0
    %161 = vmatprep.subr.mxu0 0.0
    %162 = vmatpush1.msra.mxu0 0.0
    %163 = vmatprep.subr.mxu0 0.0
    %164 = vmatpush1.msra.mxu0 0.0
    %165 = vmatprep.subr.mxu0 0.0
    %166 = vmatpush1.msra.mxu0 0.0
    %167 = vmatprep.subr.mxu0 0.0
    %168 = vmatpush1.msra.mxu0 0.0
    %169 = vmatprep.subr.mxu0 0.0
    %170 = vmatpush1.msra.mxu0 0.0
    %171 = vmatprep.subr.mxu0 0.0
    %172 = vmatpush1.msra.mxu0 0.0
    %173 = vmatprep.subr.mxu0 0.0
    %174 = vmatpush1.msra.mxu0 0.0
    %175 = vmatprep.subr.mxu0 0.0
    %176 = vmatpush1.msra.mxu0 0.0
    %177 = vmatprep.subr.mxu0 0.0
    %178 = vmatpush1.msra.mxu0 0.0
    %179 = vmatprep.subr.mxu0 0.0
    %180 = vmatpush1.msra.mxu0 0.0
    %181 = vmatprep.subr.mxu0 0.0
    %182 = vmatpush1.msra.mxu0 0.0
    %183 = vmatprep.subr.mxu0 0.0
    %184 = vmatpush1.msra.mxu0 0.0
    %185 = vmatprep.subr.mxu0 0.0
    %186 = vmatpush1.msra.mxu0 0.0
    %187 = vmatprep.mubr.f32.mxu0 0.0
    %188 = vmatmul.mubr.f32.gmra.mrb[0].mxu0 %v98
    %v189 = vpop.f32.mrb[0].mxu0
    %v190 = vadd.f32 %v121, %v189
    %v191 = vpop.f32.mrb[0].mxu0
    %192 = vmatprep.mubr.f32.mxu0 0.0
    %193 = vmatmul.mubr.f32.gmra.mrb[0].mxu0 %v99
    %v194 = vpop.f32.mrb[0].mxu0
    %v195 = vadd.f32 %v121, %v194
    %v196 = vpop.f32.mrb[0].mxu0
    %197 = vdwg.mxu0
    %v198 = vmax.f32 %v190, 0.0
    %v199 = vmax.f32 %v195, 0.0
    %v200 = vld [vmem:[#allocation2] sm:$0xff]
    %v201 = vld [vmem:[#allocation2 + $0x8] sm:$0xff]
    %v202 = vld [vmem:[#allocation9] sm:$0xff]
    %v203 = vld [vmem:[#allocation9 + $0x8] sm:$0xff]
    %v204 = vld [vmem:[#allocation9 + $0x10] sm:$0xff]
    %v205 = vld [vmem:[#allocation9 + $0x18] sm:$0xff]
    %v206 = vld [vmem:[#allocation9 + $0x20] sm:$0xff]
    %v207 = vld [vmem:[#allocation9 + $0x28] sm:$0xff]
    %v208 = vld [vmem:[#allocation9 + $0x30] sm:$0xff]
    %v209 = vld [vmem:[#allocation9 + $0x38] sm:$0xff]
    %v210 = vld [vmem:[#allocation9 + $0x40] sm:$0xff]
    %v211 = vld [vmem:[#allocation9 + $0x48] sm:$0xff]
    %v212 = vld [vmem:[#allocation9 + $0x50] sm:$0xff]
    %v213 = vld [vmem:[#allocation9 + $0x58] sm:$0xff]
    %v214 = vld [vmem:[#allocation9 + $0x60] sm:$0xff]
    %v215 = vld [vmem:[#allocation9 + $0x68] sm:$0xff]
    %v216 = vld [vmem:[#allocation9 + $0x70] sm:$0xff]
    %v217 = vld [vmem:[#allocation9 + $0x78] sm:$0xff]
    %218 = vmatprep.subr.mxu0 0.0
    %219 = vmatpush1.msra.mxu0 %v202
    %220 = vmatprep.subr.mxu0 0.0
    %221 = vmatpush1.msra.mxu0 %v203
    %222 = vmatprep.subr.mxu0 0.0
    %223 = vmatpush1.msra.mxu0 %v204
    %224 = vmatprep.subr.mxu0 0.0
    %225 = vmatpush1.msra.mxu0 %v205
    %226 = vmatprep.subr.mxu0 0.0
    %227 = vmatpush1.msra.mxu0 %v206
    %228 = vmatprep.subr.mxu0 0.0
    %229 = vmatpush1.msra.mxu0 %v207
    %230 = vmatprep.subr.mxu0 0.0
    %231 = vmatpush1.msra.mxu0 %v208
    %232 = vmatprep.subr.mxu0 0.0
    %233 = vmatpush1.msra.mxu0 %v209
    %234 = vmatprep.subr.mxu0 0.0
    %235 = vmatpush1.msra.mxu0 %v210
    %236 = vmatprep.subr.mxu0 0.0
    %237 = vmatpush1.msra.mxu0 %v211
    %238 = vmatprep.subr.mxu0 0.0
    %239 = vmatpush1.msra.mxu0 %v212
    %240 = vmatprep.subr.mxu0 0.0
    %241 = vmatpush1.msra.mxu0 %v213
    %242 = vmatprep.subr.mxu0 0.0
    %243 = vmatpush1.msra.mxu0 %v214
    %244 = vmatprep.subr.mxu0 0.0
    %245 = vmatpush1.msra.mxu0 %v215
    %246 = vmatprep.subr.mxu0 0.0
    %247 = vmatpush1.msra.mxu0 %v216
    %248 = vmatprep.subr.mxu0 0.0
    %249 = vmatpush1.msra.mxu0 %v217
    %250 = vmatprep.subr.mxu0 0.0
    %251 = vmatpush1.msra.mxu0 0.0
    %252 = vmatprep.subr.mxu0 0.0
    %253 = vmatpush1.msra.mxu0 0.0
    %254 = vmatprep.subr.mxu0 0.0
    %255 = vmatpush1.msra.mxu0 0.0
    %256 = vmatprep.subr.mxu0 0.0
    %257 = vmatpush1.msra.mxu0 0.0
    %258 = vmatprep.subr.mxu0 0.0
    %259 = vmatpush1.msra.mxu0 0.0
    %260 = vmatprep.subr.mxu0 0.0
    %261 = vmatpush1.msra.mxu0 0.0
    %262 = vmatprep.subr.mxu0 0.0
    %263 = vmatpush1.msra.mxu0 0.0
    %264 = vmatprep.subr.mxu0 0.0
    %265 = vmatpush1.msra.mxu0 0.0
    %266 = vmatprep.subr.mxu0 0.0
    %267 = vmatpush1.msra.mxu0 0.0
    %268 = vmatprep.subr.mxu0 0.0
    %269 = vmatpush1.msra.mxu0 0.0
    %270 = vmatprep.subr.mxu0 0.0
    %271 = vmatpush1.msra.mxu0 0.0
    %272 = vmatprep.subr.mxu0 0.0
    %273 = vmatpush1.msra.mxu0 0.0
    %274 = vmatprep.subr.mxu0 0.0
    %275 = vmatpush1.msra.mxu0 0.0
    %276 = vmatprep.subr.mxu0 0.0
    %277 = vmatpush1.msra.mxu0 0.0
    %278 = vmatprep.subr.mxu0 0.0
    %279 = vmatpush1.msra.mxu0 0.0
    %280 = vmatprep.subr.mxu0 0.0
    %281 = vmatpush1.msra.mxu0 0.0
    %282 = vmatprep.mubr.f32.mxu0 0.0
    %283 = vmatmul.mubr.f32.gmra.mrb[0].mxu0 %v198
    %v284 = vpop.f32.mrb[0].mxu0
    %v285 = vadd.f32 0.0, %v284
    %v286 = vpop.f32.mrb[0].mxu0
    %287 = vmatprep.mubr.f32.mxu0 0.0
    %288 = vmatmul.mubr.f32.gmra.mrb[0].mxu0 %v199
    %v289 = vpop.f32.mrb[0].mxu0
    %v290 = vadd.f32 0.0, %v289
    %v291 = vpop.f32.mrb[0].mxu0
    %292 = vdwg.mxu0
    %v293 = vadd.f32 %v200, %v285
    %v294 = vadd.f32 %v201, %v290
    %295 = vst [vmem:[#allocation2] sm:$0xff] %v293
    %296 = vst [vmem:[#allocation2 + $0x8] sm:$0xff] %v294
    // Predicated region
    $region46: #{tpu_custom_call.1} parent=1 // pred_check
      %p297 = pneg %p85
    $region47: #{tpu_custom_call.1} parent=1 // pred_check_branch
      %299 = sbr.rel (%p297) target = $region49
    $region48: #{tpu_custom_call.1} parent=1 // pred_region
      %v300 = vld [vmem:[#allocation2] sm:$0xff]
      %v301 = vld [vmem:[#allocation2 + $0x8] sm:$0xff]
      %302 = vst [vmem:[#allocation12] sm:$0xff] %v300
      %303 = vst [vmem:[#allocation12 + $0x8] sm:$0xff] %v301
    $region49: #{tpu_custom_call.1} parent=1 // pred_fallthru
      _
    // Predicated region
    $region50: #{tpu_custom_call.1} parent=1 // pred_check
      _
    $region51: #{tpu_custom_call.1} parent=1 // pred_check_branch
      %305 = sbr.rel (0) target = $region53
    $region52: #{tpu_custom_call.1} parent=1 // pred_region
      %s307 = ssub.s32 256, 256
      %308 = vsyncadd [#allocation5], %s307
      %s309 = sshll.u32 [#allocation12], 4
      %s310 = int_to_ptr.vmem [resolvable:$true] %s309
      %315 = dma.vmem_to_hbm [thread:$0]  %s310, 256, %s5, [#allocation5], 128, 128, 8
    $region53: #{tpu_custom_call.1} parent=1 // pred_fallthru
      _
    // Predicated region
    $region54: #{tpu_custom_call.1} parent=1 // pred_check
      _
    $region55: #{tpu_custom_call.1} parent=1 // pred_check_branch
      %317 = sbr.rel (0) target = $region57
    $region56: #{tpu_custom_call.1} parent=1 // pred_region
      %318 = dma.done [#allocation5], 256
    $region57: #{tpu_custom_call.1} parent=1 // pred_fallthru
      _
    %319 = vsyncpa [#allocation4], 1
    %320 = vsyncpa [#allocation7], 1
    %321 = vsyncpa [#allocation10], 1
    %322 = vsyncpa [#allocation5], 1

</llo_original>
